<compile_context>
chip_gen: v7x
topology: tpu7x:2x2x1
jax: 0.10.0
libtpu: 0.0.40
codegen_flags: <defaults>
</compile_context>

<pallas_src>
import functools

import jax
import jax.numpy as jnp
from jax import lax
from jax.experimental import pallas as pl
from jax.experimental.pallas import tpu as pltpu

EPS = 1e-5  # InstanceNorm2d default eps


def _upblock_kernel(cols_ref, w_ref, o_ref, sum_ref, ssq_ref, mean_ref, rstd_ref,
                    *, cout, n_m):
    """Grid = (N, 2, MT): (batch, pass, M-tile).  Pass 0 = moments, pass 1 = normalize+store.

    cols_ref: (1, 4*Cin, TM) bf16   2x2-patch taps of x, spatial lane-dense
    w_ref   : (4*Cout, 4*Cin) bf16  per-parity-plane conv weights
    o_ref   : (1, 4*Cout, TM) bf16  4 parity planes (plane-major rows)
    sum_ref : (4*Cout, 1) f32 VMEM  running per-row sum across M tiles
    ssq_ref : (4*Cout, 1) f32 VMEM  running per-row sum of squares
    mean_ref: (Cout, 1)  f32 VMEM   per-channel mean
    rstd_ref: (Cout, 1)  f32 VMEM   per-channel 1/sqrt(var + eps)
    """
    p = pl.program_id(1)
    m = pl.program_id(2)
    tm = cols_ref.shape[-1]

    # Shared by both passes: the cheap K=4*Cin conv matmul for this M tile (f32 accumulate).
    acc = jnp.dot(w_ref[...], cols_ref[0],
                  preferred_element_type=jnp.float32)          # (4*Cout, TM)

    @pl.when(p == 0)
    def _moments():
        @pl.when(m == 0)
        def _init():
            sum_ref[...] = jnp.zeros_like(sum_ref)
            ssq_ref[...] = jnp.zeros_like(ssq_ref)

        sum_ref[...] += jnp.sum(acc, axis=-1, keepdims=True)
        ssq_ref[...] += jnp.sum(acc * acc, axis=-1, keepdims=True)

        @pl.when(m == n_m - 1)
        def _finalize():
            # Pool the 4 parity planes per channel (plane-major row layout -> contiguous
            # sublane slices; Cout is a multiple of 8 in practice so these stay aligned).
            s = (sum_ref[0:cout] + sum_ref[cout:2 * cout]
                 + sum_ref[2 * cout:3 * cout] + sum_ref[3 * cout:4 * cout])
            ss = (ssq_ref[0:cout] + ssq_ref[cout:2 * cout]
                  + ssq_ref[2 * cout:3 * cout] + ssq_ref[3 * cout:4 * cout])
            inv_cnt = 1.0 / (4.0 * n_m * tm)
            mean = s * inv_cnt
            # Guard against tiny negative variance from E[x^2]-mean^2 cancellation (f32).
            var = jnp.maximum(ss * inv_cnt - mean * mean, 0.0)
            mean_ref[...] = mean
            rstd_ref[...] = lax.rsqrt(var + EPS)               # EUP slot

    @pl.when(p == 1)
    def _normalize():
        mean = mean_ref[...]                                   # (Cout, 1)
        scale = rstd_ref[...]
        # Per-parity-plane slice writes straight into the bf16 output block.
        for q in range(4):
            blk = acc[q * cout:(q + 1) * cout]
            o_ref[0, q * cout:(q + 1) * cout, :] = jnp.maximum(
                (blk - mean) * scale, 0.0).astype(o_ref.dtype)


def _vmem_limit_bytes():
    """Per-generation scoped-VMEM limit: ~75% of physical, capped, with a safe fallback."""
    default = 48 * 2**20
    try:
        cap = int(pltpu.get_tpu_info().vmem_capacity_bytes)
        if cap <= 0:
            return default
        return max(32 * 2**20, min(cap * 3 // 4, 100 * 2**20))
    except Exception:  # no info available -> conservative default (fits every generation)
        return default


def _pick_m_tile(m_total, cin, cout, budget_bytes):
    """Largest multiple of 128 that divides M and fits the VMEM budget; M itself if tiny."""
    # per-output-column bytes: 2x double-buffered bf16 cols + bf16 out blocks + one f32 acc.
    per_col = 2 * (4 * cin * 2) + 2 * (4 * cout * 2) + (4 * cout * 4)
    cap = max(128, int(budget_bytes // max(per_col, 1)) // 128 * 128)
    if m_total <= cap or m_total % 128 != 0:
        return m_total                      # single tile (tiny shape, or M not 128-aligned)
    best = 128
    t = 128
    while t <= min(m_total, cap):
        if m_total % t == 0:
            best = t
        t += 128
    return best


def upblock_forward(x_nchw, w_t, bias=None, *, out_dtype=jnp.float32):
    """Forward pass matching torch UpBlock.

    x_nchw: (N, Cin, H, W)    float32 (PyTorch NCHW)
    w_t   : (Cin, Cout, 3, 3) ConvTranspose2d weight (PyTorch layout)
    bias  : (Cout,) -- intentionally unused: cancelled exactly by InstanceNorm (affine=False)
    returns (N, Cout, 2H, 2W) in out_dtype (bf16 MXU path; stated precision contract)
    """
    del bias
    N, Cin, H, W = x_nchw.shape
    Cout = w_t.shape[1]
    M = H * W

    # ---- glue: shared 2x2-patch cols (bf16).  allow_input_fusion lets XLA fold this
    #      pad/slice/concat into the kernel's input instead of an HBM round-trip. ----
    xpad = jnp.pad(x_nchw.astype(jnp.bfloat16), ((0, 0), (0, 0), (0, 1), (0, 1)))
    taps = [xpad[:, :, dh:dh + H, dw:dw + W]                   # tap order: (0,0),(0,1),(1,0),(1,1)
            for dh in (0, 1) for dw in (0, 1)]
    cols = jnp.concatenate(taps, axis=1).reshape(N, 4 * Cin, M)

    # ---- per-parity-plane weights: (parity, offset) -> kernel index of w_t, None = unused tap ----
    tap_idx = {(0, 0): 1, (0, 1): None, (1, 0): 2, (1, 1): 0}
    blocks = []
    for ph in (0, 1):
        for pw in (0, 1):
            row = []
            for dh in (0, 1):
                for dw in (0, 1):
                    kh, kw = tap_idx[(ph, dh)], tap_idx[(pw, dw)]
                    if kh is None or kw is None:
                        row.append(jnp.zeros((Cout, Cin), w_t.dtype))
                    else:
                        row.append(w_t[:, :, kh, kw].T)        # (Cout, Cin)
            blocks.append(jnp.concatenate(row, axis=1))        # (Cout, 4*Cin)
    w_all = jnp.concatenate(blocks, axis=0).astype(jnp.bfloat16)  # (4*Cout, 4*Cin)

    # ---- tiling / VMEM budget ----
    vmem_limit = _vmem_limit_bytes()
    TM = _pick_m_tile(M, Cin, Cout, int(vmem_limit * 0.6))     # leave double-buffer headroom
    MT = M // TM

    kernel = functools.partial(_upblock_kernel, cout=Cout, n_m=MT)

    flops = 2 * 2 * (4 * Cout) * (4 * Cin) * M * N             # matmul runs in both passes
    bytes_accessed = (2 * N * 4 * Cin * M * 2                  # cols read twice (two passes)
                      + N * 4 * Cout * M * 2                   # bf16 output write
                      + 4 * Cout * 4 * Cin * 2)                # weights

    out_flat = pl.pallas_call(
        kernel,
        out_shape=jax.ShapeDtypeStruct((N, 4 * Cout, M), jnp.bfloat16),
        grid=(N, 2, MT),                                       # (batch, pass, M tiles)
        in_specs=[
            pl.BlockSpec((1, 4 * Cin, TM), lambda n, p, m: (n, 0, m)),
            pl.BlockSpec((4 * Cout, 4 * Cin), lambda n, p, m: (0, 0)),
        ],
        # During the stats pass (p==0) the out block stays at (n,0,0): never written, never
        # flushed.  Each (n,0,m) block is then written exactly once in pass 1 -> no revisits,
        # no garbage writebacks.
        out_specs=pl.BlockSpec((1, 4 * Cout, TM), lambda n, p, m: (n, 0, m * p)),
        scratch_shapes=[
            pltpu.VMEM((4 * Cout, 1), jnp.float32),            # running sum
            pltpu.VMEM((4 * Cout, 1), jnp.float32),            # running sum-sq
            pltpu.VMEM((Cout, 1), jnp.float32),                # mean
            pltpu.VMEM((Cout, 1), jnp.float32),                # 1/sqrt(var+eps)
        ],
        compiler_params=pltpu.CompilerParams(
            dimension_semantics=("parallel", "arbitrary", "arbitrary"),
            vmem_limit_bytes=vmem_limit,
            allow_input_fusion=[True, False],                  # fuse cols producer, not weights
        ),
        cost_estimate=pl.CostEstimate(
            flops=flops, transcendentals=N * Cout, bytes_accessed=bytes_accessed),
    )(cols, w_all)

    # ---- pixel-shuffle the 4 parity planes back to (N, Cout, 2H, 2W), in bf16; the final
    #      dtype cast fuses with the transpose. ----
    out = out_flat.reshape(N, 2, 2, Cout, H, W)                # (n, ph, pw, c, h, w)
    out = jnp.transpose(out, (0, 3, 4, 1, 5, 2))               # (n, c, h, ph, w, pw)
    return out.reshape(N, Cout, 2 * H, 2 * W).astype(out_dtype)


def _reference(x_nchw, w_t, bias):
    """Pure-JAX f32 reference (includes the bias, which InstanceNorm must cancel)."""
    x_nhwc = jnp.transpose(x_nchw, (0, 2, 3, 1))
    wc = jnp.transpose(w_t[:, :, ::-1, ::-1], (2, 3, 0, 1))    # HWIO
    conv = lax.conv_general_dilated(
        x_nhwc, wc, window_strides=(1, 1),
        padding=[(1, 2), (1, 2)], lhs_dilation=(2, 2),
        dimension_numbers=("NHWC", "HWIO", "NHWC")) + bias
    mean = conv.mean(axis=(1, 2), keepdims=True)
    var = ((conv - mean) ** 2).mean(axis=(1, 2), keepdims=True)
    y = jnp.maximum((conv - mean) * lax.rsqrt(var + EPS), 0.0)
    return jnp.transpose(y, (0, 3, 1, 2))


if __name__ == "__main__":
    N, Cin, Cout, H, W = 2, 4, 8, 16, 16
    key = jax.random.PRNGKey(0)
    kx, kw, kb = jax.random.split(key, 3)

    x = jax.random.normal(kx, (N, Cin, H, W), dtype=jnp.float32)
    w_t = 0.1 * jax.random.normal(kw, (Cin, Cout, 3, 3), dtype=jnp.float32)
    bias = 0.1 * jax.random.normal(kb, (Cout,), dtype=jnp.float32)

    fwd = jax.jit(upblock_forward)
    out = jax.block_until_ready(fwd(x, w_t, bias))

    ref = _reference(x, w_t, bias)
    assert out.shape == (N, Cout, 2 * H, 2 * W), out.shape
    assert out.dtype == jnp.float32, out.dtype
    # bf16 MXU inputs, f32 accumulation, bf16 output store -> loosened tolerance vs the
    # all-f32 reference (intentional precision contract).
    assert jnp.allclose(out, ref, atol=5e-2, rtol=5e-2), "mismatch vs reference"

    print("KERNEL_OK")
</pallas_src>

<mosaic_0001>
module attributes {stable_mosaic.version = 11 : i64} {
  func.func @_upblock_kernel(%arg0: i32, %arg1: i32, %arg2: i32, %arg3: memref<1x16x256xbf16, #tpu.memory_space<vmem>>, %arg4: memref<32x16xbf16, #tpu.memory_space<vmem>>, %arg5: memref<1x32x256xbf16, #tpu.memory_space<vmem>>, %arg6: memref<32x1xf32, #tpu.memory_space<vmem>>, %arg7: memref<32x1xf32, #tpu.memory_space<vmem>>, %arg8: memref<8x1xf32, #tpu.memory_space<vmem>>, %arg9: memref<8x1xf32, #tpu.memory_space<vmem>>) attributes {dimension_semantics = [#tpu.dimension_semantics<parallel>, #tpu.dimension_semantics<arbitrary>, #tpu.dimension_semantics<arbitrary>], iteration_bounds = array<i64: 2, 2, 1>, scalar_prefetch = 0 : i64, scratch_operands = 4 : i64, tpu.core_type = #tpu.core_type<tc>, window_params = [{transform_indices = @transform_0, window_bounds = array<i64: 1, 16, 256>}, {pipeline_mode = #tpu.pipeline_mode<synchronous>, transform_indices = @transform_1, window_bounds = array<i64: 32, 16>}, {transform_indices = @transform_2, window_bounds = array<i64: 1, 32, 256>}]} {
    %c0 = arith.constant 0 : index
    %c0_0 = arith.constant 0 : index
    %0 = vector.load %arg4[%c0, %c0_0] : memref<32x16xbf16, #tpu.memory_space<vmem>>, vector<32x16xbf16>
    %c0_1 = arith.constant 0 : index
    %c0_2 = arith.constant 0 : index
    %c0_3 = arith.constant 0 : index
    %1 = vector.load %arg3[%c0_1, %c0_2, %c0_3] : memref<1x16x256xbf16, #tpu.memory_space<vmem>>, vector<1x16x256xbf16>
    %2 = vector.shape_cast %1 : vector<1x16x256xbf16> to vector<16x256xbf16>
    %cst = arith.constant dense<0.000000e+00> : vector<32x256xf32>
    %3 = tpu.matmul %0, %2, %cst {dimension_numbers = #tpu.dot_dimension_numbers<[1], [0], [0], [1], [0, 0, 1, 1], [], []>} : vector<32x16xbf16>, vector<16x256xbf16>, vector<32x256xf32> -> vector<32x256xf32>
    %c0_i32 = arith.constant 0 : i32
    %4 = arith.cmpi eq, %arg1, %c0_i32 : i32
    %5 = arith.extui %4 : i1 to i32
    %c0_i32_4 = arith.constant 0 : i32
    %6 = arith.cmpi ne, %5, %c0_i32_4 : i32
    scf.if %6 {
      %c0_i32_6 = arith.constant 0 : i32
      %10 = arith.cmpi eq, %arg2, %c0_i32_6 : i32
      %11 = arith.extui %10 : i1 to i32
      %c0_i32_7 = arith.constant 0 : i32
      %12 = arith.cmpi ne, %11, %c0_i32_7 : i32
      scf.if %12 {
        %cst_20 = arith.constant 0.000000e+00 : f32
        %27 = vector.broadcast %cst_20 : f32 to vector<32x1xf32>
        %c0_21 = arith.constant 0 : index
        %c0_22 = arith.constant 0 : index
        %28 = vector.load %arg6[%c0_21, %c0_22] : memref<32x1xf32, #tpu.memory_space<vmem>>, vector<32x1xf32>
        tpu.vector_store %arg6[%c0_21, %c0_22], %27 {strides = array<i32>} : memref<32x1xf32, #tpu.memory_space<vmem>>, vector<32x1xf32>,
        %cst_23 = arith.constant 0.000000e+00 : f32
        %29 = vector.broadcast %cst_23 : f32 to vector<32x1xf32>
        %c0_24 = arith.constant 0 : index
        %c0_25 = arith.constant 0 : index
        %30 = vector.load %arg7[%c0_24, %c0_25] : memref<32x1xf32, #tpu.memory_space<vmem>>, vector<32x1xf32>
        tpu.vector_store %arg7[%c0_24, %c0_25], %29 {strides = array<i32>} : memref<32x1xf32, #tpu.memory_space<vmem>>, vector<32x1xf32>,
      } else {
      }
      %c0_8 = arith.constant 0 : index
      %c0_9 = arith.constant 0 : index
      %13 = vector.load %arg6[%c0_8, %c0_9] : memref<32x1xf32, #tpu.memory_space<vmem>>, vector<32x1xf32>
      %cst_10 = arith.constant dense<0.000000e+00> : vector<32xf32>
      %14 = vector.multi_reduction <add>, %3, %cst_10 [1] : vector<32x256xf32> to vector<32xf32>
      %15 = vector.shape_cast %14 : vector<32xf32> to vector<32x1xf32>
      %16 = arith.addf %13, %15 : vector<32x1xf32>
      %c0_11 = arith.constant 0 : index
      %c0_12 = arith.constant 0 : index
      %17 = vector.load %arg6[%c0_11, %c0_12] : memref<32x1xf32, #tpu.memory_space<vmem>>, vector<32x1xf32>
      tpu.vector_store %arg6[%c0_11, %c0_12], %16 {strides = array<i32>} : memref<32x1xf32, #tpu.memory_space<vmem>>, vector<32x1xf32>,
      %c0_13 = arith.constant 0 : index
      %c0_14 = arith.constant 0 : index
      %18 = vector.load %arg7[%c0_13, %c0_14] : memref<32x1xf32, #tpu.memory_space<vmem>>, vector<32x1xf32>
      %19 = arith.mulf %3, %3 : vector<32x256xf32>
      %cst_15 = arith.constant dense<0.000000e+00> : vector<32xf32>
      %20 = vector.multi_reduction <add>, %19, %cst_15 [1] : vector<32x256xf32> to vector<32xf32>
      %21 = vector.shape_cast %20 : vector<32xf32> to vector<32x1xf32>
      %22 = arith.addf %18, %21 : vector<32x1xf32>
      %c0_16 = arith.constant 0 : index
      %c0_17 = arith.constant 0 : index
      %23 = vector.load %arg7[%c0_16, %c0_17] : memref<32x1xf32, #tpu.memory_space<vmem>>, vector<32x1xf32>
      tpu.vector_store %arg7[%c0_16, %c0_17], %22 {strides = array<i32>} : memref<32x1xf32, #tpu.memory_space<vmem>>, vector<32x1xf32>,
      %c0_i32_18 = arith.constant 0 : i32
      %24 = arith.cmpi eq, %arg2, %c0_i32_18 : i32
      %25 = arith.extui %24 : i1 to i32
      %c0_i32_19 = arith.constant 0 : i32
      %26 = arith.cmpi ne, %25, %c0_i32_19 : i32
      scf.if %26 {
        %c0_20 = arith.constant 0 : index
        %c0_21 = arith.constant 0 : index
        %27 = vector.load %arg6[%c0_20, %c0_21] : memref<32x1xf32, #tpu.memory_space<vmem>>, vector<8x1xf32>
        %c8 = arith.constant 8 : index
        %c0_22 = arith.constant 0 : index
        %28 = vector.load %arg6[%c8, %c0_22] : memref<32x1xf32, #tpu.memory_space<vmem>>, vector<8x1xf32>
        %29 = arith.addf %27, %28 : vector<8x1xf32>
        %c16 = arith.constant 16 : index
        %c0_23 = arith.constant 0 : index
        %30 = vector.load %arg6[%c16, %c0_23] : memref<32x1xf32, #tpu.memory_space<vmem>>, vector<8x1xf32>
        %31 = arith.addf %29, %30 : vector<8x1xf32>
        %c24 = arith.constant 24 : index
        %c0_24 = arith.constant 0 : index
        %32 = vector.load %arg6[%c24, %c0_24] : memref<32x1xf32, #tpu.memory_space<vmem>>, vector<8x1xf32>
        %33 = arith.addf %31, %32 : vector<8x1xf32>
        %c0_25 = arith.constant 0 : index
        %c0_26 = arith.constant 0 : index
        %34 = vector.load %arg7[%c0_25, %c0_26] : memref<32x1xf32, #tpu.memory_space<vmem>>, vector<8x1xf32>
        %c8_27 = arith.constant 8 : index
        %c0_28 = arith.constant 0 : index
        %35 = vector.load %arg7[%c8_27, %c0_28] : memref<32x1xf32, #tpu.memory_space<vmem>>, vector<8x1xf32>
        %36 = arith.addf %34, %35 : vector<8x1xf32>
        %c16_29 = arith.constant 16 : index
        %c0_30 = arith.constant 0 : index
        %37 = vector.load %arg7[%c16_29, %c0_30] : memref<32x1xf32, #tpu.memory_space<vmem>>, vector<8x1xf32>
        %38 = arith.addf %36, %37 : vector<8x1xf32>
        %c24_31 = arith.constant 24 : index
        %c0_32 = arith.constant 0 : index
        %39 = vector.load %arg7[%c24_31, %c0_32] : memref<32x1xf32, #tpu.memory_space<vmem>>, vector<8x1xf32>
        %40 = arith.addf %38, %39 : vector<8x1xf32>
        %cst_33 = arith.constant 9.765625E-4 : f32
        %41 = vector.broadcast %cst_33 : f32 to vector<8x1xf32>
        %42 = arith.mulf %33, %41 : vector<8x1xf32>
        %cst_34 = arith.constant 9.765625E-4 : f32
        %43 = vector.broadcast %cst_34 : f32 to vector<8x1xf32>
        %44 = arith.mulf %40, %43 : vector<8x1xf32>
        %45 = arith.mulf %42, %42 : vector<8x1xf32>
        %46 = arith.subf %44, %45 : vector<8x1xf32>
        %cst_35 = arith.constant 0.000000e+00 : f32
        %47 = vector.broadcast %cst_35 : f32 to vector<8x1xf32>
        %48 = arith.maximumf %46, %47 : vector<8x1xf32>
        %c0_36 = arith.constant 0 : index
        %c0_37 = arith.constant 0 : index
        %49 = vector.load %arg8[%c0_36, %c0_37] : memref<8x1xf32, #tpu.memory_space<vmem>>, vector<8x1xf32>
        tpu.vector_store %arg8[%c0_36, %c0_37], %42 {strides = array<i32>} : memref<8x1xf32, #tpu.memory_space<vmem>>, vector<8x1xf32>,
        %cst_38 = arith.constant 9.99999974E-6 : f32
        %50 = vector.broadcast %cst_38 : f32 to vector<8x1xf32>
        %51 = arith.addf %48, %50 : vector<8x1xf32>
        %52 = math.rsqrt %51 : vector<8x1xf32>
        %c0_39 = arith.constant 0 : index
        %c0_40 = arith.constant 0 : index
        %53 = vector.load %arg9[%c0_39, %c0_40] : memref<8x1xf32, #tpu.memory_space<vmem>>, vector<8x1xf32>
        tpu.vector_store %arg9[%c0_39, %c0_40], %52 {strides = array<i32>} : memref<8x1xf32, #tpu.memory_space<vmem>>, vector<8x1xf32>,
      } else {
      }
    } else {
    }
    %c1_i32 = arith.constant 1 : i32
    %7 = arith.cmpi eq, %arg1, %c1_i32 : i32
    %8 = arith.extui %7 : i1 to i32
    %c0_i32_5 = arith.constant 0 : i32
    %9 = arith.cmpi ne, %8, %c0_i32_5 : i32
    scf.if %9 {
      %c0_6 = arith.constant 0 : index
      %c0_7 = arith.constant 0 : index
      %10 = vector.load %arg8[%c0_6, %c0_7] : memref<8x1xf32, #tpu.memory_space<vmem>>, vector<8x1xf32>
      %c0_8 = arith.constant 0 : index
      %c0_9 = arith.constant 0 : index
      %11 = vector.load %arg9[%c0_8, %c0_9] : memref<8x1xf32, #tpu.memory_space<vmem>>, vector<8x1xf32>
      %12 = vector.extract_strided_slice %3 {offsets = [0, 0], sizes = [8, 256], strides = [1, 1]} : vector<32x256xf32> to vector<8x256xf32>
      %13 = vector.broadcast %10 : vector<8x1xf32> to vector<8x256xf32>
      %14 = arith.subf %12, %13 : vector<8x256xf32>
      %15 = vector.broadcast %11 : vector<8x1xf32> to vector<8x256xf32>
      %16 = arith.mulf %14, %15 : vector<8x256xf32>
      %cst_10 = arith.constant 0.000000e+00 : f32
      %17 = vector.broadcast %cst_10 : f32 to vector<8x256xf32>
      %18 = arith.maximumf %16, %17 : vector<8x256xf32>
      %19 = arith.truncf %18 : vector<8x256xf32> to vector<8x256xbf16>
      %c0_11 = arith.constant 0 : index
      %c0_12 = arith.constant 0 : index
      %c0_13 = arith.constant 0 : index
      %20 = vector.load %arg5[%c0_11, %c0_12, %c0_13] : memref<1x32x256xbf16, #tpu.memory_space<vmem>>, vector<1x8x256xbf16>
      %21 = vector.shape_cast %20 : vector<1x8x256xbf16> to vector<8x256xbf16>
      %22 = vector.shape_cast %19 : vector<8x256xbf16> to vector<1x8x256xbf16>
      tpu.vector_store %arg5[%c0_11, %c0_12, %c0_13], %22 {strides = array<i32>} : memref<1x32x256xbf16, #tpu.memory_space<vmem>>, vector<1x8x256xbf16>,
      %23 = vector.extract_strided_slice %3 {offsets = [8, 0], sizes = [8, 256], strides = [1, 1]} : vector<32x256xf32> to vector<8x256xf32>
      %24 = vector.broadcast %10 : vector<8x1xf32> to vector<8x256xf32>
      %25 = arith.subf %23, %24 : vector<8x256xf32>
      %26 = vector.broadcast %11 : vector<8x1xf32> to vector<8x256xf32>
      %27 = arith.mulf %25, %26 : vector<8x256xf32>
      %cst_14 = arith.constant 0.000000e+00 : f32
      %28 = vector.broadcast %cst_14 : f32 to vector<8x256xf32>
      %29 = arith.maximumf %27, %28 : vector<8x256xf32>
      %30 = arith.truncf %29 : vector<8x256xf32> to vector<8x256xbf16>
      %c0_15 = arith.constant 0 : index
      %c8 = arith.constant 8 : index
      %c0_16 = arith.constant 0 : index
      %31 = vector.load %arg5[%c0_15, %c8, %c0_16] : memref<1x32x256xbf16, #tpu.memory_space<vmem>>, vector<1x8x256xbf16>
      %32 = vector.shape_cast %31 : vector<1x8x256xbf16> to vector<8x256xbf16>
      %33 = vector.shape_cast %30 : vector<8x256xbf16> to vector<1x8x256xbf16>
      tpu.vector_store %arg5[%c0_15, %c8, %c0_16], %33 {strides = array<i32>} : memref<1x32x256xbf16, #tpu.memory_space<vmem>>, vector<1x8x256xbf16>,
      %34 = vector.extract_strided_slice %3 {offsets = [16, 0], sizes = [8, 256], strides = [1, 1]} : vector<32x256xf32> to vector<8x256xf32>
      %35 = vector.broadcast %10 : vector<8x1xf32> to vector<8x256xf32>
      %36 = arith.subf %34, %35 : vector<8x256xf32>
      %37 = vector.broadcast %11 : vector<8x1xf32> to vector<8x256xf32>
      %38 = arith.mulf %36, %37 : vector<8x256xf32>
      %cst_17 = arith.constant 0.000000e+00 : f32
      %39 = vector.broadcast %cst_17 : f32 to vector<8x256xf32>
      %40 = arith.maximumf %38, %39 : vector<8x256xf32>
      %41 = arith.truncf %40 : vector<8x256xf32> to vector<8x256xbf16>
      %c0_18 = arith.constant 0 : index
      %c16 = arith.constant 16 : index
      %c0_19 = arith.constant 0 : index
      %42 = vector.load %arg5[%c0_18, %c16, %c0_19] : memref<1x32x256xbf16, #tpu.memory_space<vmem>>, vector<1x8x256xbf16>
      %43 = vector.shape_cast %42 : vector<1x8x256xbf16> to vector<8x256xbf16>
      %44 = vector.shape_cast %41 : vector<8x256xbf16> to vector<1x8x256xbf16>
      tpu.vector_store %arg5[%c0_18, %c16, %c0_19], %44 {strides = array<i32>} : memref<1x32x256xbf16, #tpu.memory_space<vmem>>, vector<1x8x256xbf16>,
      %45 = vector.extract_strided_slice %3 {offsets = [24, 0], sizes = [8, 256], strides = [1, 1]} : vector<32x256xf32> to vector<8x256xf32>
      %46 = vector.broadcast %10 : vector<8x1xf32> to vector<8x256xf32>
      %47 = arith.subf %45, %46 : vector<8x256xf32>
      %48 = vector.broadcast %11 : vector<8x1xf32> to vector<8x256xf32>
      %49 = arith.mulf %47, %48 : vector<8x256xf32>
      %cst_20 = arith.constant 0.000000e+00 : f32
      %50 = vector.broadcast %cst_20 : f32 to vector<8x256xf32>
      %51 = arith.maximumf %49, %50 : vector<8x256xf32>
      %52 = arith.truncf %51 : vector<8x256xf32> to vector<8x256xbf16>
      %c0_21 = arith.constant 0 : index
      %c24 = arith.constant 24 : index
      %c0_22 = arith.constant 0 : index
      %53 = vector.load %arg5[%c0_21, %c24, %c0_22] : memref<1x32x256xbf16, #tpu.memory_space<vmem>>, vector<1x8x256xbf16>
      %54 = vector.shape_cast %53 : vector<1x8x256xbf16> to vector<8x256xbf16>
      %55 = vector.shape_cast %52 : vector<8x256xbf16> to vector<1x8x256xbf16>
      tpu.vector_store %arg5[%c0_21, %c24, %c0_22], %55 {strides = array<i32>} : memref<1x32x256xbf16, #tpu.memory_space<vmem>>, vector<1x8x256xbf16>,
    } else {
    }
    return
  }
  func.func @transform_0(%arg0: i32, %arg1: i32, %arg2: i32) -> (i32, i32, i32) {
    %c0_i32 = arith.constant 0 : i32
    %c0_i32_0 = arith.constant 0 : i32
    return %arg0, %c0_i32, %arg2 : i32, i32, i32
  }
  func.func @transform_1(%arg0: i32, %arg1: i32, %arg2: i32) -> (i32, i32) {
    %c0_i32 = arith.constant 0 : i32
    %c0_i32_0 = arith.constant 0 : i32
    %c0_i32_1 = arith.constant 0 : i32
    return %c0_i32, %c0_i32_0 : i32, i32
  }
  func.func @transform_2(%arg0: i32, %arg1: i32, %arg2: i32) -> (i32, i32, i32) {
    %0 = arith.muli %arg2, %arg1 : i32
    %c0_i32 = arith.constant 0 : i32
    %c0_i32_0 = arith.constant 0 : i32
    return %arg0, %c0_i32, %0 : i32, i32, i32
  }
}

</mosaic_0001>

<llo_original>
// kernel: upblock_forward.1
$region0: #{upblock_forward.1}
  #allocation0 [shape = 'u32[]', space=smem, size = 0x4, offset = 0x4, fixed_abs, tag = 'smem constant byte address 0x4 - core index']
  #allocation1 [shape = 'u32[144,128]{1,0:T(1,128)}', space=vmem, size = 0x12000, scoped, tag = 'internal scratch']
  #allocation2 [shape = 'f32[32,1]{1,0:T(8,128)}', space=vmem, size = 0x4000, scoped, tag = 'scratch operand']
  #allocation3 [shape = 'f32[32,1]{1,0:T(8,128)}', space=vmem, size = 0x4000, scoped, tag = 'scratch operand']
  #allocation4 [shape = 'f32[8,1]{1,0:T(8,128)}', space=vmem, size = 0x1000, scoped, tag = 'scratch operand']
  #allocation5 [shape = 'f32[8,1]{1,0:T(8,128)}', space=vmem, size = 0x1000, scoped, tag = 'scratch operand']
  %s0 = inlined_call_operand.vmem [shape: bf16[2,16,256], index: 0, kind: input, shape index: {}]
  %s1 = inlined_call_operand.vmem [shape: bf16[32,16], index: 1, kind: input, shape index: {}]
  %s2 = inlined_call_operand.vmem [shape: bf16[2,32,256], index: 2, kind: output, shape index: {}]
  %s3 = sld [smem:[#allocation0]]
  $region57: #{upblock_forward.1} parent=0
    _
  %s5 = ssub.s32 1, %s3
  %s6 = scalar_select 0, %s5, %s3
  loop: start=0, step=1, limit=6
  $region2: #{upblock_forward.1} parent=0 // loop_pre_header
    _
  $region3: #{upblock_forward.1} parent=0 // loop_header
    %s8 = sphi 0, %s12
    %p9 = scmp.ge.s32.totalorder %s8, 6
    %s15 = sphi 0, %s34
    %s16 = sphi 0, %s30
    %s17 = sphi 0, %s26
    %s18 = sphi 0, %s15
    %s19 = sphi 0, %s16
    %s20 = sphi 0, %s17
    %s21 = sphi 0, %s18
    %s22 = sphi 0, %s19
    %s23 = sphi 0, %s20
    %s39 = sphi 0, %s41
    %s42 = sphi 0, %s39
    %s43 = sphi 0, %s42
    %s59 = sphi 0, %s43
    %s63 = sphi 0, %s63
    %s65 = sphi 0, %s63
    %s66 = sphi 0, %s65
    %s80 = sphi 0, %s66
    %s90 = sphi 0, %s92
    %s93 = sphi 0, %s90
    %s94 = sphi 0, %s93
    %s110 = sphi 0, %s94
  $region4: #{upblock_forward.1} parent=0 // loop_header_branch
    %11 = sbr.rel (%p9) target = $region8
  $region5: #{upblock_forward.1} parent=0 // loop_body
    %s13 = ssub.s32 %s8, 1
    %s14 = ssub.s32 %s8, 2
    %s24 = sadd.s32 1, %s17
    %p25 = scmp.ge.s32.totalorder %s24, 1
    %s26 = scalar_select %p25, 0, %s24
    %s27 = sadd.s32 1, %s16
    %s28 = scalar_select %p25, %s27, %s16
    %p29 = scmp.ge.s32.totalorder %s28, 2
    %s30 = scalar_select %p29, 0, %s28
    %s31 = sadd.s32 1, %s15
    %s32 = scalar_select %p29, %s31, %s15
    %p33 = scmp.ge.s32.totalorder %s32, 2
    %s34 = scalar_select %p33, 0, %s32
    %s35 = ssub.s32 %s15, %s34
    %s36 = ssub.s32 %s17, %s26
    %s37 = sor.u32 %s35, %s36
    %p38 = scmp.eq.s32.totalorder %s37, 0
    %s40 = sadd.s32 %s39, 1
    %s41 = scalar_select %p38, %s39, %s40
    %p44 = pneg %p38
    %p45 = scmp.eq.s32.totalorder %s8, 3
    %p46 = por %p44, %p45
    %p47 = scmp.ne.s32.totalorder %s39, %s42
    %p48 = scmp.eq.s32.totalorder %s8, 0
    %p49 = por %p47, %p48
    %p50 = scmp.ne.s32.totalorder %s39, %s42
    %p51 = scmp.eq.s32.totalorder %s13, 3
    %p52 = por %p50, %p51
    %p53 = scmp.ne.s32.totalorder %s42, %s43
    %p54 = scmp.eq.s32.totalorder %s13, 0
    %p55 = por %p53, %p54
    %p56 = scmp.ne.s32.totalorder %s42, %s43
    %p57 = scmp.eq.s32.totalorder %s14, 3
    %p58 = por %p56, %p57
    %p60 = scmp.ne.s32.totalorder %s43, %s59
    %p61 = scmp.eq.s32.totalorder %s14, 0
    %p62 = por %p60, %p61
    %s64 = sadd.s32 %s63, 1
    %p67 = scmp.eq.s32.totalorder %s8, 3
    %p68 = scmp.ne.s32.totalorder %s63, %s65
    %p69 = scmp.eq.s32.totalorder %s8, 0
    %p70 = por %p68, %p69
    %p71 = scmp.ne.s32.totalorder %s63, %s65
    %p72 = scmp.eq.s32.totalorder %s13, 3
    %p73 = por %p71, %p72
    %p74 = scmp.ne.s32.totalorder %s65, %s66
    %p75 = scmp.eq.s32.totalorder %s13, 0
    %p76 = por %p74, %p75
    %p77 = scmp.ne.s32.totalorder %s65, %s66
    %p78 = scmp.eq.s32.totalorder %s14, 3
    %p79 = por %p77, %p78
    %p81 = scmp.ne.s32.totalorder %s66, %s80
    %p82 = scmp.eq.s32.totalorder %s14, 0
    %p83 = por %p81, %p82
    %s84 = smul.u32 %s17, %s16
    %s85 = smul.u32 %s26, %s30
    %s86 = ssub.s32 %s15, %s34
    %s87 = ssub.s32 %s84, %s85
    %s88 = sor.u32 %s86, %s87
    %p89 = scmp.eq.s32.totalorder %s88, 0
    %s91 = sadd.s32 %s90, 1
    %s92 = scalar_select %p89, %s90, %s91
    %p95 = pneg %p89
    %p96 = scmp.eq.s32.totalorder %s8, 3
    %p97 = por %p95, %p96
    %p98 = scmp.ne.s32.totalorder %s90, %s93
    %p99 = scmp.eq.s32.totalorder %s8, 0
    %p100 = por %p98, %p99
    %p101 = scmp.ne.s32.totalorder %s90, %s93
    %p102 = scmp.eq.s32.totalorder %s13, 3
    %p103 = por %p101, %p102
    %p104 = scmp.ne.s32.totalorder %s93, %s94
    %p105 = scmp.eq.s32.totalorder %s13, 0
    %p106 = por %p104, %p105
    %p107 = scmp.ne.s32.totalorder %s93, %s94
    %p108 = scmp.eq.s32.totalorder %s14, 3
    %p109 = por %p107, %p108
    %p111 = scmp.ne.s32.totalorder %s94, %s110
    %p112 = scmp.eq.s32.totalorder %s14, 0
    %p113 = por %p111, %p112
    %p114 = scmp.le.s32.totalorder 1, %s8
    %p115 = scmp.lt.s32.totalorder %s8, 5
    %p116 = pnand %p114, %p115
    %p117 = pneg %p116
    // Predicated region
    $region9: #{upblock_forward.1} parent=5 // pred_check
      _
    $region10: #{upblock_forward.1} parent=5 // pred_check_branch
      %119 = sbr.rel (%p116) target = $region12
    $region11: #{upblock_forward.1} parent=5 // pred_region
      %s120 = ssub.s32 %s8, 1
      // Predicated region
      $region13: #{upblock_forward.1} parent=11 // pred_check
        %p121 = pneg %p76
      $region14: #{upblock_forward.1} parent=11 // pred_check_branch
        %123 = sbr.rel (%p121) target = $region16
      $region15: #{upblock_forward.1} parent=11 // pred_region
        _
      $region16: #{upblock_forward.1} parent=11 // pred_fallthru
        _
    $region12: #{upblock_forward.1} parent=5 // pred_fallthru
      _
    %p124 = scmp.lt.s32.totalorder %s8, 4
    // Predicated region
    $region17: #{upblock_forward.1} parent=5 // pred_check
      %p125 = pneg %p124
    $region18: #{upblock_forward.1} parent=5 // pred_check_branch
      %127 = sbr.rel (%p125) target = $region20
    $region19: #{upblock_forward.1} parent=5 // pred_region
      // Predicated region
      $region21: #{upblock_forward.1} parent=19 // pred_check
        %p128 = pneg %p49
      $region22: #{upblock_forward.1} parent=19 // pred_check_branch
        %130 = sbr.rel (%p128) target = $region24
      $region23: #{upblock_forward.1} parent=19 // pred_region
        %s131 = smul.u32 2, %s17
        %p132 = scmp.lt.s32.totalorder %s15, 1
        %s133 = scalar_select %p132, %s15, 1
        %p134 = scmp.lt.s32.totalorder %s131, 1
        %s135 = scalar_select %p134, %s131, 1
        %s136 = smul.addr %s133, 4
        %s137 = sadd.s32 %s135, %s136
        %s138 = smul.addr %s137, 4
        %s139 = scalar_lea.vmem %s0, %s138
        %s140 = smul.u32 2, %s17
      $region24: #{upblock_forward.1} parent=19 // pred_fallthru
        _
    $region20: #{upblock_forward.1} parent=5 // pred_fallthru
      _
    %p141 = scmp.le.s32.totalorder 1, %s8
    %p142 = scmp.lt.s32.totalorder %s8, 5
    %p143 = pnand %p141, %p142
    %p144 = pneg %p143
    // Predicated region
    $region25: #{upblock_forward.1} parent=5 // pred_check
      _
    $region26: #{upblock_forward.1} parent=5 // pred_check_branch
      %146 = sbr.rel (%p143) target = $region28
    $region27: #{upblock_forward.1} parent=5 // pred_region
      %s147 = ssub.s32 %s8, 1
      %s148 = smul.u32 2, %s20
      %p149 = scmp.lt.s32.totalorder %s18, 1
      %s150 = scalar_select %p149, %s18, 1
      %p151 = scmp.lt.s32.totalorder %s148, 1
      %s152 = scalar_select %p151, %s148, 1
      %s153 = smul.addr %s150, 4
      %s154 = sadd.s32 %s152, %s153
      %s155 = smul.addr %s154, 4
      %s156 = scalar_lea.vmem %s0, %s155
      %p157 = pneg %p55
      %p158 = pneg %p52
      %p159 = pneg %p76
      %p160 = pneg %p73
      %p161 = pneg %p106
      %p162 = pneg %p103
      %s163 = smul.u32 %s20, %s19
      %s164 = smul.u32 2, %s163
      %p165 = scmp.lt.s32.totalorder %s18, 1
      %s166 = scalar_select %p165, %s18, 1
      %p167 = scmp.lt.s32.totalorder %s164, 1
      %s168 = scalar_select %p167, %s164, 1
      %s169 = smul.addr %s166, 8
      %s170 = sadd.s32 %s168, %s169
      %s171 = smul.addr %s170, 4
      %s172 = scalar_lea.vmem %s2, %s171
      %s173 = smul.u32 2, %s20
      %p174 = scmp.lt.s32.totalorder %s18, 1
      %s175 = scalar_select %p174, %s18, 1
      %p176 = scmp.lt.s32.totalorder %s173, 1
      %s177 = scalar_select %p176, %s173, 1
      %s178 = smul.addr %s175, 4
      %s179 = sadd.s32 %s177, %s178
      %s180 = smul.addr %s179, 4
      %s181 = scalar_lea.vmem %s0, %s180
      %s182 = smul.u32 2, %s20
      %s183 = smul.u32 %s20, %s19
      %s184 = smul.u32 2, %s183
      %p185 = scmp.lt.s32.totalorder %s18, 1
      %s186 = scalar_select %p185, %s18, 1
      %p187 = scmp.lt.s32.totalorder %s184, 1
      %s188 = scalar_select %p187, %s184, 1
      %s189 = smul.addr %s186, 8
      %s190 = sadd.s32 %s188, %s189
      %s191 = smul.addr %s190, 4
      %s192 = scalar_lea.vmem %s2, %s191
      %s193 = smul.u32 %s20, %s19
      %s194 = smul.u32 2, %s193
      %v196 = vld [vmem:[%s1] sm:$0xf]
      %v197 = vld [vmem:[%s1 + $0x4] sm:$0xf]
      %v198 = vld [vmem:[%s1 + $0x8] sm:$0xf]
      %v199 = vld [vmem:[%s1 + $0xc] sm:$0xf]
      %v200 = vld [vmem:[%s181] sm:$0xff]
      %v201 = vld [vmem:[%s181 + $0x8] sm:$0xff]
      %v206 = vunpack.c.l.b16 %v196
      %v207 = vunpack.c.l.b16 %v197
      %v208 = vunpack.c.l.b16 %v198
      %v209 = vunpack.c.l.b16 %v199
      %v210 = vpack.c.b16 %v207, %v206
      %v211 = vpack.c.b16 %v209, %v208
      %v214 = vunpack.c.l.b16 %v200
      %v215 = vunpack.c.h.b16 %v200
      %v216 = vunpack.c.l.b16 %v201
      %v217 = vunpack.c.h.b16 %v201
      %v218 = vpack.c.b16 %v216, %v214
      %v219 = vpack.c.b16 %v217, %v215
      %vm222 = vcmask 130048
      %v224 = vsel %vm222, %v210, 0
      %v227 = vsel %vm222, %v211, 0
      %229 = vmatprep.subr.bf16.mxu0 %v219
      %230 = vmatpush1.bf16.msra.mxu0 %v218
      %231 = vmatprep.subr.bf16.mxu0 0
      %232 = vmatpush1.bf16.msra.mxu0 0
      %233 = vmatprep.subr.bf16.mxu0 0
      %234 = vmatpush1.bf16.msra.mxu0 0
      %235 = vmatprep.subr.bf16.mxu0 0
      %236 = vmatpush1.bf16.msra.mxu0 0
      %237 = vmatprep.subr.bf16.mxu0 0
      %238 = vmatpush1.bf16.msra.mxu0 0
      %239 = vmatprep.subr.bf16.mxu0 0
      %240 = vmatpush1.bf16.msra.mxu0 0
      %241 = vmatprep.subr.bf16.mxu0 0
      %242 = vmatpush1.bf16.msra.mxu0 0
      %243 = vmatprep.subr.bf16.mxu0 0
      %244 = vmatpush1.bf16.msra.mxu0 0
      %245 = vmatprep.subr.bf16.mxu0 0
      %246 = vmatpush1.bf16.msra.mxu0 0
      %247 = vmatprep.subr.bf16.mxu0 0
      %248 = vmatpush1.bf16.msra.mxu0 0
      %249 = vmatprep.subr.bf16.mxu0 0
      %250 = vmatpush1.bf16.msra.mxu0 0
      %251 = vmatprep.subr.bf16.mxu0 0
      %252 = vmatpush1.bf16.msra.mxu0 0
      %253 = vmatprep.subr.bf16.mxu0 0
      %254 = vmatpush1.bf16.msra.mxu0 0
      %255 = vmatprep.subr.bf16.mxu0 0
      %256 = vmatpush1.bf16.msra.mxu0 0
      %257 = vmatprep.subr.bf16.mxu0 0
      %258 = vmatpush1.bf16.msra.mxu0 0
      %259 = vmatprep.subr.bf16.mxu0 0
      %260 = vmatpush1.bf16.msra.mxu0 0
      %261 = vmatprep.mubr.bf16.mxu0 0
      %262 = vmatmul.mubr.bf16.gmra.mrb[0].mxu0 %v224
      %v263 = vpop.f32.mrb[0].mxu0
      %v264 = vadd.f32 0.0, %v263
      %v265 = vpop.f32.mrb[0].mxu0
      %v266 = vadd.f32 0.0, %v265
      %v267 = vpop.f32.mrb[0].mxu0
      %v268 = vadd.f32 0.0, %v267
      %v269 = vpop.f32.mrb[0].mxu0
      %v270 = vadd.f32 0.0, %v269
      %271 = vmatprep.mubr.bf16.mxu0 0
      %272 = vmatmul.mubr.bf16.gmra.mrb[0].mxu0 %v227
      %v273 = vpop.f32.mrb[0].mxu0
      %v274 = vadd.f32 0.0, %v273
      %v275 = vpop.f32.mrb[0].mxu0
      %v276 = vadd.f32 0.0, %v275
      %v277 = vpop.f32.mrb[0].mxu0
      %v278 = vadd.f32 0.0, %v277
      %v279 = vpop.f32.mrb[0].mxu0
      %v280 = vadd.f32 0.0, %v279
      %281 = vdwg.mxu0
      %p282 = scmp.eq.s32.totalorder %s19, 0
      // Predicated region
      $region29: #{upblock_forward.1} parent=27 // pred_check
        %p283 = pneg %p282
      $region30: #{upblock_forward.1} parent=27 // pred_check_branch
        %285 = sbr.rel (%p283) target = $region32
      $region31: #{upblock_forward.1} parent=27 // pred_region
        %p286 = scmp.eq.s32.totalorder %s20, 0
        // Predicated region
        $region33: #{upblock_forward.1} parent=31 // pred_check
          %p287 = pneg %p286
        $region34: #{upblock_forward.1} parent=31 // pred_check_branch
          %289 = sbr.rel (%p287) target = $region36
        $region35: #{upblock_forward.1} parent=31 // pred_region
          %vm290 = vcmask 7168
          %291 = vst.msk [vmem:[#allocation2] sm:$0xff] %vm290, 0.0
          %292 = vst.msk [vmem:[#allocation2 + $0x8] sm:$0xff] %vm290, 0.0
          %293 = vst.msk [vmem:[#allocation2 + $0x10] sm:$0xff] %vm290, 0.0
          %294 = vst.msk [vmem:[#allocation2 + $0x18] sm:$0xff] %vm290, 0.0
          %295 = vst.msk [vmem:[#allocation3] sm:$0xff] %vm290, 0.0
          %296 = vst.msk [vmem:[#allocation3 + $0x8] sm:$0xff] %vm290, 0.0
          %297 = vst.msk [vmem:[#allocation3 + $0x10] sm:$0xff] %vm290, 0.0
          %298 = vst.msk [vmem:[#allocation3 + $0x18] sm:$0xff] %vm290, 0.0
        $region36: #{upblock_forward.1} parent=31 // pred_fallthru
          _
        %v299 = vld [vmem:[#allocation2] sm:$0xff]
        %v300 = vld [vmem:[#allocation2 + $0x8] sm:$0xff]
        %v301 = vld [vmem:[#allocation2 + $0x10] sm:$0xff]
        %v302 = vld [vmem:[#allocation2 + $0x18] sm:$0xff]
        %v303 = vadd.f32 %v264, %v266
        %304 = vadd.xlane.f32.xlu0 %v303
        %v305 = vpop.xlane.xlu0 %304
        %v306 = vadd.f32 %v268, %v270
        %307 = vadd.xlane.f32.xlu0 %v306
        %v308 = vpop.xlane.xlu0 %307
        %v309 = vadd.f32 %v274, %v276
        %310 = vadd.xlane.f32.xlu0 %v309
        %v311 = vpop.xlane.xlu0 %310
        %v312 = vadd.f32 %v278, %v280
        %313 = vadd.xlane.f32.xlu0 %v312
        %v314 = vpop.xlane.xlu0 %313
        %v315 = vadd.f32 %v299, %v305
        %v316 = vadd.f32 %v300, %v308
        %v317 = vadd.f32 %v301, %v311
        %v318 = vadd.f32 %v302, %v314
        %vm319 = vcmask 7168
        %320 = vst.msk [vmem:[#allocation2] sm:$0xff] %vm319, %v315
        %321 = vst.msk [vmem:[#allocation2 + $0x8] sm:$0xff] %vm319, %v316
        %322 = vst.msk [vmem:[#allocation2 + $0x10] sm:$0xff] %vm319, %v317
        %323 = vst.msk [vmem:[#allocation2 + $0x18] sm:$0xff] %vm319, %v318
        %v324 = vld [vmem:[#allocation3] sm:$0xff]
        %v325 = vld [vmem:[#allocation3 + $0x8] sm:$0xff]
        %v326 = vld [vmem:[#allocation3 + $0x10] sm:$0xff]
        %v327 = vld [vmem:[#allocation3 + $0x18] sm:$0xff]
        %v328 = vmul.f32 %v264, %v264
        %v329 = vmul.f32 %v266, %v266
        %v330 = vmul.f32 %v268, %v268
        %v331 = vmul.f32 %v270, %v270
        %v332 = vmul.f32 %v274, %v274
        %v333 = vmul.f32 %v276, %v276
        %v334 = vmul.f32 %v278, %v278
        %v335 = vmul.f32 %v280, %v280
        %v336 = vadd.f32 %v328, %v329
        %337 = vadd.xlane.f32.xlu0 %v336
        %v338 = vpop.xlane.xlu0 %337
        %v339 = vadd.f32 %v330, %v331
        %340 = vadd.xlane.f32.xlu0 %v339
        %v341 = vpop.xlane.xlu0 %340
        %v342 = vadd.f32 %v332, %v333
        %343 = vadd.xlane.f32.xlu0 %v342
        %v344 = vpop.xlane.xlu0 %343
        %v345 = vadd.f32 %v334, %v335
        %346 = vadd.xlane.f32.xlu0 %v345
        %v347 = vpop.xlane.xlu0 %346
        %v348 = vadd.f32 %v324, %v338
        %v349 = vadd.f32 %v325, %v341
        %v350 = vadd.f32 %v326, %v344
        %v351 = vadd.f32 %v327, %v347
        %352 = vst.msk [vmem:[#allocation3] sm:$0xff] %vm319, %v348
        %353 = vst.msk [vmem:[#allocation3 + $0x8] sm:$0xff] %vm319, %v349
        %354 = vst.msk [vmem:[#allocation3 + $0x10] sm:$0xff] %vm319, %v350
        %355 = vst.msk [vmem:[#allocation3 + $0x18] sm:$0xff] %vm319, %v351
        // Predicated region
        $region37: #{upblock_forward.1} parent=31 // pred_check
          %p356 = pneg %p286
        $region38: #{upblock_forward.1} parent=31 // pred_check_branch
          %358 = sbr.rel (%p356) target = $region40
        $region39: #{upblock_forward.1} parent=31 // pred_region
          %v359 = vld [vmem:[#allocation2] sm:$0xff]
          %v360 = vld [vmem:[#allocation2 + $0x8] sm:$0xff]
          %v361 = vadd.f32 %v359, %v360
          %v362 = vld [vmem:[#allocation2 + $0x10] sm:$0xff]
          %v363 = vadd.f32 %v361, %v362
          %v364 = vld [vmem:[#allocation2 + $0x18] sm:$0xff]
          %v365 = vadd.f32 %v363, %v364
          %v366 = vld [vmem:[#allocation3] sm:$0xff]
          %v367 = vld [vmem:[#allocation3 + $0x8] sm:$0xff]
          %v368 = vadd.f32 %v366, %v367
          %v369 = vld [vmem:[#allocation3 + $0x10] sm:$0xff]
          %v370 = vadd.f32 %v368, %v369
          %v371 = vld [vmem:[#allocation3 + $0x18] sm:$0xff]
          %v372 = vadd.f32 %v370, %v371
          %v373 = vmul.f32 %v365, 0.0009765625
          %v374 = vmul.f32 %v372, 0.0009765625
          %v375 = vmul.f32 %v373, %v373
          %v376 = vsub.f32 %v374, %v375
          %v377 = vmax.f32 %v376, 0.0
          %378 = vst.msk [vmem:[#allocation4] sm:$0xff] %vm319, %v373
          %v379 = vadd.f32 %v377, 1e-05
          %v380 = vrsqrt.pop %v379
          %381 = vst.msk [vmem:[#allocation5] sm:$0xff] %vm319, %v380
        $region40: #{upblock_forward.1} parent=31 // pred_fallthru
          _
      $region32: #{upblock_forward.1} parent=27 // pred_fallthru
        _
      %p382 = scmp.eq.s32.totalorder %s19, 1
      // Predicated region
      $region41: #{upblock_forward.1} parent=27 // pred_check
        %p383 = pneg %p382
      $region42: #{upblock_forward.1} parent=27 // pred_check_branch
        %385 = sbr.rel (%p383) target = $region44
      $region43: #{upblock_forward.1} parent=27 // pred_region
        %v386 = vld [vmem:[#allocation4] sm:$0xff]
        %v387 = vld [vmem:[#allocation5] sm:$0xff]
        %389 = vset.pattern.permute.xlu0 0
        %390 = vperm.xlu0 %389, %v386
        %v391 = vpop.permute.xlu0 %390
        %v393 = vsub.f32 %v264, %v391
        %v394 = vsub.f32 %v266, %v391
        %396 = vset.pattern.permute.xlu0 0
        %397 = vperm.xlu0 %396, %v387
        %v398 = vpop.permute.xlu0 %397
        %v400 = vmul.f32 %v393, %v398
        %v401 = vmul.f32 %v394, %v398
        %v402 = vmax.f32 %v400, 0.0
        %v403 = vmax.f32 %v401, 0.0
        %v404 = vpack.c.bf16 %v402, %v402
        %v405 = vpack.c.bf16 %v403, %v403
        %v408 = vunpack.c.l.b16 %v404
        %v409 = vunpack.c.l.b16 %v405
        %v410 = vpack.c.b16 %v409, %v408
        %412 = vst [vmem:[%s192] sm:$0xff] %v410
        %v413 = vsub.f32 %v268, %v391
        %v414 = vsub.f32 %v270, %v391
        %v415 = vmul.f32 %v413, %v398
        %v416 = vmul.f32 %v414, %v398
        %v417 = vmax.f32 %v415, 0.0
        %v418 = vmax.f32 %v416, 0.0
        %v419 = vpack.c.bf16 %v417, %v417
        %v420 = vpack.c.bf16 %v418, %v418
        %v423 = vunpack.c.l.b16 %v419
        %v424 = vunpack.c.l.b16 %v420
        %v425 = vpack.c.b16 %v424, %v423
        %427 = vst [vmem:[%s192 + $0x8] sm:$0xff] %v425
        %v428 = vsub.f32 %v274, %v391
        %v429 = vsub.f32 %v276, %v391
        %v430 = vmul.f32 %v428, %v398
        %v431 = vmul.f32 %v429, %v398
        %v432 = vmax.f32 %v430, 0.0
        %v433 = vmax.f32 %v431, 0.0
        %v434 = vpack.c.bf16 %v432, %v432
        %v435 = vpack.c.bf16 %v433, %v433
        %v438 = vunpack.c.l.b16 %v434
        %v439 = vunpack.c.l.b16 %v435
        %v440 = vpack.c.b16 %v439, %v438
        %442 = vst [vmem:[%s192 + $0x10] sm:$0xff] %v440
        %v443 = vsub.f32 %v278, %v391
        %v444 = vsub.f32 %v280, %v391
        %v445 = vmul.f32 %v443, %v398
        %v446 = vmul.f32 %v444, %v398
        %v447 = vmax.f32 %v445, 0.0
        %v448 = vmax.f32 %v446, 0.0
        %v449 = vpack.c.bf16 %v447, %v447
        %v450 = vpack.c.bf16 %v448, %v448
        %v453 = vunpack.c.l.b16 %v449
        %v454 = vunpack.c.l.b16 %v450
        %v455 = vpack.c.b16 %v454, %v453
        %457 = vst [vmem:[%s192 + $0x18] sm:$0xff] %v455
      $region44: #{upblock_forward.1} parent=27 // pred_fallthru
        _
      %s458 = smul.u32 %s20, %s19
      %s459 = smul.u32 2, %s458
      %p460 = scmp.lt.s32.totalorder %s18, 1
      %s461 = scalar_select %p460, %s18, 1
      %p462 = scmp.lt.s32.totalorder %s459, 1
      %s463 = scalar_select %p462, %s459, 1
      %s464 = smul.addr %s461, 8
      %s465 = sadd.s32 %s463, %s464
      %s466 = smul.addr %s465, 4
      %s467 = scalar_lea.vmem %s2, %s466
      // Predicated region
      $region45: #{upblock_forward.1} parent=27 // pred_check
        %p468 = pneg %p103
      $region46: #{upblock_forward.1} parent=27 // pred_check_branch
        %470 = sbr.rel (%p468) target = $region48
      $region47: #{upblock_forward.1} parent=27 // pred_region
        %s471 = smul.u32 %s20, %s19
        %s472 = smul.u32 2, %s471
      $region48: #{upblock_forward.1} parent=27 // pred_fallthru
        _
    $region28: #{upblock_forward.1} parent=5 // pred_fallthru
      _
    %p473 = scmp.le.s32.totalorder 2, %s8
    // Predicated region
    $region49: #{upblock_forward.1} parent=5 // pred_check
      %p474 = pneg %p473
    $region50: #{upblock_forward.1} parent=5 // pred_check_branch
      %476 = sbr.rel (%p474) target = $region52
    $region51: #{upblock_forward.1} parent=5 // pred_region
      %s477 = ssub.s32 %s8, 2
      // Predicated region
      $region53: #{upblock_forward.1} parent=51 // pred_check
        %p478 = pneg %p109
      $region54: #{upblock_forward.1} parent=51 // pred_check_branch
        %480 = sbr.rel (%p478) target = $region56
      $region55: #{upblock_forward.1} parent=51 // pred_region
        %s481 = smul.u32 %s23, %s22
        %s482 = smul.u32 2, %s481
        %p483 = scmp.lt.s32.totalorder %s21, 1
        %s484 = scalar_select %p483, %s21, 1
        %p485 = scmp.lt.s32.totalorder %s482, 1
        %s486 = scalar_select %p485, %s482, 1
        %s487 = smul.addr %s484, 8
        %s488 = sadd.s32 %s486, %s487
        %s489 = smul.addr %s488, 4
        %s490 = scalar_lea.vmem %s2, %s489
      $region56: #{upblock_forward.1} parent=51 // pred_fallthru
        _
    $region52: #{upblock_forward.1} parent=5 // pred_fallthru
      _
  $region6: #{upblock_forward.1} parent=0 // loop_footer
    %s12 = sadd.s32 1, %s8
  $region7: #{upblock_forward.1} parent=0 // loop_footer_branch
    %7 = sbr.rel target = $region3
  $region8: #{upblock_forward.1} parent=0 // loop_exit
    _

</llo_original>
